<compile_context>
chip_gen: v7x
topology: tpu7x:2x2x1
jax: 0.10.0
libtpu: 0.0.40
codegen_flags: <defaults>
</compile_context>

<pallas_src>
import functools

import jax
import jax.numpy as jnp
from jax.experimental import pallas as pl
from jax.experimental.pallas import tpu as pltpu


# --------------------------------------------------------------------------- #
# Kernel body
# --------------------------------------------------------------------------- #
def _mlp_kernel(x_ref, w1_ref, b1_ref, wp_ref, bp_ref, o_ref, acc_ref):
    # x_ref : (tm, C)        token tile (activation dtype)
    # w1_ref: (C, 2*th)      fused c_fc tile: [:, :th] -> y cols, [:, th:] -> gate cols
    # b1_ref: (1, 2*th)      fused c_fc bias tile (f32)
    # wp_ref: (th, C)        c_proj tile along its K (=H) axis
    # bp_ref: (1, C)         c_proj bias (f32)
    # o_ref : (tm, C)        output tile
    # acc_ref: (tm, C) f32   resident accumulator across the H (reduction) axis
    j = pl.program_id(1)
    th = wp_ref.shape[0]

    @pl.when(j == 0)
    def _():
        acc_ref[...] = jnp.zeros_like(acc_ref)

    x = x_ref[...]  # keep native dtype (bf16/f32) for the MXU
    # Single fused c_fc GEMM for this H tile; f32 accumulate + f32 bias.
    yg = jnp.dot(x, w1_ref[...], preferred_element_type=jnp.float32) + b1_ref[...]
    # th is either a multiple of 64 (lane-aligned pair) or the full H, so these
    # slices stay layout-friendly.
    y = yg[:, :th]
    gate = yg[:, th:]

    # SiLU(y) * gate in f32 (sigmoid on the EUP), then down-cast to match the
    # c_proj weight dtype for the second MXU pass.
    h = (y * jax.nn.sigmoid(y)) * gate

    acc_ref[...] += jnp.dot(
        h.astype(wp_ref.dtype), wp_ref[...], preferred_element_type=jnp.float32
    )

    @pl.when(j == pl.num_programs(1) - 1)
    def _():
        o_ref[...] = (acc_ref[...] + bp_ref[...]).astype(o_ref.dtype)


# --------------------------------------------------------------------------- #
# Chip-adaptive tile selection
# --------------------------------------------------------------------------- #
_TM_TARGETS = (1024, 768, 512, 384, 256, 128, 64, 32, 16, 8)
_TH_FIXED = (512, 384, 256, 128, 64)


def _physical_vmem_bytes():
    """Per-TensorCore VMEM capacity; conservative default if the query fails."""
    try:
        info = pltpu.get_tpu_info()
        for attr in ("vmem_capacity_bytes", "vmem_bytes", "vmem_size_bytes"):
            v = getattr(info, attr, None)
            if v:
                return int(v)
    except Exception:
        pass
    return 64 * 1024 * 1024  # v7x per-TC size: safe lower bound everywhere


def _vmem_estimate(tm, th, C, x_itemsize, w_itemsize):
    """Rough per-step VMEM footprint (double-buffered I/O + f32 intermediates)."""
    b = 0
    b += 2 * tm * C * x_itemsize            # x tile (double-buffered)
    b += 2 * tm * C * x_itemsize            # out tile
    b += 2 * C * 2 * th * w_itemsize        # fused c_fc tile
    b += 2 * th * C * w_itemsize            # c_proj tile
    b += 2 * (2 * th + C) * 4               # biases (f32)
    b += tm * C * 4                         # f32 accumulator scratch
    b += tm * 2 * th * 4 + tm * th * 4      # yg + h f32 intermediates
    return b


def _th_options(H):
    opts = [H]
    for t in _TH_FIXED:
        if t < H and H % t == 0:
            opts.append(t)
    return opts


def _choose_th(H, C, itemsize, budget):
    """Pick the hidden tile at weight-packing time (M-independent)."""
    opts = _th_options(H)
    for tm_t in _TM_TARGETS:
        for th in opts:  # prefer weights-resident (th == H) first
            if _vmem_estimate(tm_t, th, C, itemsize, itemsize) <= budget:
                return th
    return opts[-1]


def _choose_tm(M, target):
    """Return (tm, m_pad): an aligned tile dividing m_pad (>= M)."""
    target = max(8, min(target, M))
    for step in (256, 128, 8):
        t = (target // step) * step
        while t >= step:
            if M % t == 0:
                return t, M
            t -= step
    if M <= target:
        return M, M  # full-dim block is always a legal block shape
    t = (target // 8) * 8
    m_pad = ((M + t - 1) // t) * t
    return t, m_pad


def _choose_tm_for_call(M, th, C, x_itemsize, w_itemsize, budget):
    tm, m_pad = _choose_tm(M, _TM_TARGETS[-1])
    for tm_t in _TM_TARGETS:
        tm_c, mp_c = _choose_tm(M, tm_t)
        if _vmem_estimate(tm_c, th, C, x_itemsize, w_itemsize) <= budget:
            tm, m_pad = tm_c, mp_c
            break
    # Keep >= 2 M tiles on big problems so the parallel axis can shard across
    # both TensorCores on v7x.
    if m_pad // tm < 2 and M >= 256:
        tm2, mp2 = _choose_tm(M, max(8, tm // 2))
        if mp2 // tm2 >= 2:
            tm, m_pad = tm2, mp2
    return tm, m_pad


# --------------------------------------------------------------------------- #
# One-time weight packing (hoisted out of the per-call path)
# --------------------------------------------------------------------------- #
def pack_mlp_params(w_fc, b_fc, w_proj, b_proj, *, dtype=None, th=None):
    """Pack PyTorch-layout weights once.

    w_fc: (2H, C) = (d_ff, n_embd), b_fc: (2H,), w_proj: (C, H), b_proj: (C,).
    Returns a dict of packed arrays + the hidden tile size used for interleave.
    """
    d_ff, C = w_fc.shape
    assert d_ff % 2 == 0
    H = d_ff // 2
    if dtype is None:
        dtype = w_fc.dtype
    itemsize = jnp.dtype(dtype).itemsize
    if th is None:
        budget = int(_physical_vmem_bytes() * 0.65)
        th = _choose_th(H, C, itemsize, budget)
    assert H % th == 0
    n_h = H // th

    w_fc_t = jnp.asarray(w_fc).T.astype(dtype)        # (C, 2H): [:H]=y, [H:]=gate
    wa = w_fc_t[:, :H].reshape(C, n_h, th)
    wg = w_fc_t[:, H:].reshape(C, n_h, th)
    # Interleave per H-tile so one (C, 2*th) block = [y_tile_j | gate_tile_j].
    w1 = jnp.concatenate([wa, wg], axis=-1).reshape(C, 2 * H)
    ba = jnp.asarray(b_fc[:H], jnp.float32).reshape(n_h, th)
    bg = jnp.asarray(b_fc[H:], jnp.float32).reshape(n_h, th)
    b1 = jnp.concatenate([ba, bg], axis=-1).reshape(1, 2 * H)

    wp = jnp.asarray(w_proj).T.astype(dtype)           # (H, C)
    bp = jnp.asarray(b_proj, jnp.float32).reshape(1, C)

    return {"w1": w1, "b1": b1, "wp": wp, "bp": bp, "th": int(th), "C": int(C), "H": int(H)}


# --------------------------------------------------------------------------- #
# pallas_call wrapper
# --------------------------------------------------------------------------- #
@functools.partial(jax.jit, static_argnames=("tm", "th", "m_pad", "vmem_limit"))
def _mlp_swiglu_call(xm, w1, b1, wp, bp, *, tm, th, m_pad, vmem_limit):
    M, C = xm.shape
    H = wp.shape[0]
    n_h = H // th

    if m_pad != M:
        xm = jnp.pad(xm, ((0, m_pad - M), (0, 0)))

    grid = (m_pad // tm, n_h)  # token tiles (parallel) x H tiles (reduction, last)

    # Advisory cost estimate: weights are re-streamed once per M tile unless
    # their block index is constant (n_h == 1), in which case they load once.
    x_bytes = m_pad * C * xm.dtype.itemsize
    weight_passes = 1 if n_h == 1 else (m_pad // tm)
    bytes_accessed = int(
        x_bytes                                   # read x
        + x_bytes                                 # write out
        + weight_passes * (w1.size * w1.dtype.itemsize + wp.size * wp.dtype.itemsize)
        + b1.size * 4 + bp.size * 4
    )
    flops = 2 * m_pad * C * (2 * H) + 2 * m_pad * H * C
    cost = pl.CostEstimate(
        flops=flops, transcendentals=m_pad * H, bytes_accessed=bytes_accessed
    )

    out = pl.pallas_call(
        _mlp_kernel,
        out_shape=jax.ShapeDtypeStruct((m_pad, C), xm.dtype),
        grid_spec=pltpu.PrefetchScalarGridSpec(
            num_scalar_prefetch=0,
            grid=grid,
            in_specs=[
                pl.BlockSpec((tm, C), lambda i, j: (i, 0)),        # x tile
                pl.BlockSpec((C, 2 * th), lambda i, j: (0, j)),    # fused c_fc tile
                pl.BlockSpec((1, 2 * th), lambda i, j: (0, j)),    # fused c_fc bias
                pl.BlockSpec((th, C), lambda i, j: (j, 0)),        # c_proj tile
                pl.BlockSpec((1, C), lambda i, j: (0, 0)),         # c_proj bias
            ],
            out_specs=pl.BlockSpec((tm, C), lambda i, j: (i, 0)),
            scratch_shapes=[pltpu.VMEM((tm, C), jnp.float32)],
        ),
        compiler_params=pltpu.CompilerParams(
            dimension_semantics=("parallel", "arbitrary"),
            vmem_limit_bytes=vmem_limit,
        ),
        cost_estimate=cost,
    )(xm, w1, b1, wp, bp)

    if m_pad != M:
        out = out[:M]
    return out


def mlp_swiglu(x, params):
    """x: (B, T, C) activations; params: output of pack_mlp_params()."""
    B, T, C = x.shape
    assert C == params["C"]
    H, th = params["H"], params["th"]
    M = B * T

    physical = _physical_vmem_bytes()
    budget = int(physical * 0.65)
    x_itemsize = jnp.dtype(x.dtype).itemsize
    w_itemsize = params["w1"].dtype.itemsize

    tm, m_pad = _choose_tm_for_call(M, th, C, x_itemsize, w_itemsize, budget)
    est = _vmem_estimate(tm, th, C, x_itemsize, w_itemsize)
    vmem_limit = int(max(32 << 20, min(int(physical * 0.85), est + (8 << 20))))

    xm = x.reshape(M, C)
    out = _mlp_swiglu_call(
        xm, params["w1"], params["b1"], params["wp"], params["bp"],
        tm=tm, th=th, m_pad=m_pad, vmem_limit=vmem_limit,
    )
    return out.reshape(B, T, C)


# --------------------------------------------------------------------------- #
# Pure-JAX reference mirroring the PyTorch forward
# --------------------------------------------------------------------------- #
def mlp_ref(x, w_fc, b_fc, w_proj, b_proj):
    y = jnp.einsum("btc,fc->btf", x, w_fc) + b_fc
    half = w_fc.shape[0] // 2
    a, gate = y[..., :half], y[..., half:]
    h = (a * jax.nn.sigmoid(a)) * gate
    return jnp.einsum("bth,ch->btc", h, w_proj) + b_proj


if __name__ == "__main__":
    # Small config: n_embd = 32 -> d_ff = 96, half = 48.  (Real configs use
    # C / H multiples of 128, where the adaptive tiling picks large lane-dense
    # tiles; the toy shapes fall back to full-array blocks.)
    B, T, C = 2, 8, 32
    d_ff = 3 * C
    half = d_ff // 2

    key = jax.random.PRNGKey(0)
    kx, k1, k2, k3, k4 = jax.random.split(key, 5)

    x = jax.random.normal(kx, (B, T, C), dtype=jnp.float32)
    # PyTorch Linear layout: weight = (out, in).
    w_fc = jax.random.normal(k1, (d_ff, C), dtype=jnp.float32) * 0.02
    b_fc = jax.random.normal(k2, (d_ff,), dtype=jnp.float32) * 0.02
    w_proj = jax.random.normal(k3, (C, half), dtype=jnp.float32) * 0.02
    b_proj = jax.random.normal(k4, (C,), dtype=jnp.float32) * 0.02

    # One-time weight packing (outside the per-call path), dtype matched to x.
    params = pack_mlp_params(w_fc, b_fc, w_proj, b_proj, dtype=x.dtype)

    out = mlp_swiglu(x, params)
    out = jax.block_until_ready(out)

    ref = mlp_ref(x, w_fc, b_fc, w_proj, b_proj)
    assert out.shape == (B, T, C)
    assert jnp.allclose(out, ref, atol=1e-4, rtol=1e-4), "mismatch vs reference"

    print("KERNEL_OK")
</pallas_src>

<mosaic_0001>
module attributes {stable_mosaic.version = 11 : i64} {
  func.func @_mlp_kernel(%arg0: i32, %arg1: i32, %arg2: memref<16x32xf32, #tpu.memory_space<vmem>>, %arg3: memref<32x96xf32, #tpu.memory_space<vmem>>, %arg4: memref<1x96xf32, #tpu.memory_space<vmem>>, %arg5: memref<48x32xf32, #tpu.memory_space<vmem>>, %arg6: memref<1x32xf32, #tpu.memory_space<vmem>>, %arg7: memref<16x32xf32, #tpu.memory_space<vmem>>, %arg8: memref<16x32xf32, #tpu.memory_space<vmem>>) attributes {dimension_semantics = [#tpu.dimension_semantics<parallel>, #tpu.dimension_semantics<arbitrary>], iteration_bounds = array<i64: 1, 1>, scalar_prefetch = 0 : i64, scratch_operands = 1 : i64, tpu.core_type = #tpu.core_type<tc>, window_params = [{transform_indices = @transform_0, window_bounds = array<i64: 16, 32>}, {transform_indices = @transform_1, window_bounds = array<i64: 32, 96>}, {transform_indices = @transform_2, window_bounds = array<i64: 1, 96>}, {transform_indices = @transform_3, window_bounds = array<i64: 48, 32>}, {pipeline_mode = #tpu.pipeline_mode<synchronous>, transform_indices = @transform_4, window_bounds = array<i64: 1, 32>}, {transform_indices = @transform_5, window_bounds = array<i64: 16, 32>}]} {
    %c0_i32 = arith.constant 0 : i32
    %0 = arith.cmpi eq, %arg1, %c0_i32 : i32
    %1 = arith.extui %0 : i1 to i32
    %c0_i32_0 = arith.constant 0 : i32
    %2 = arith.cmpi ne, %1, %c0_i32_0 : i32
    scf.if %2 {
      %cst_16 = arith.constant 0.000000e+00 : f32
      %26 = vector.broadcast %cst_16 : f32 to vector<16x32xf32>
      %c0_17 = arith.constant 0 : index
      %c0_18 = arith.constant 0 : index
      %27 = vector.load %arg8[%c0_17, %c0_18] : memref<16x32xf32, #tpu.memory_space<vmem>>, vector<16x32xf32>
      tpu.vector_store %arg8[%c0_17, %c0_18], %26 {strides = array<i32>} : memref<16x32xf32, #tpu.memory_space<vmem>>, vector<16x32xf32>,
    } else {
    }
    %c0 = arith.constant 0 : index
    %c0_1 = arith.constant 0 : index
    %3 = vector.load %arg2[%c0, %c0_1] : memref<16x32xf32, #tpu.memory_space<vmem>>, vector<16x32xf32>
    %c0_2 = arith.constant 0 : index
    %c0_3 = arith.constant 0 : index
    %4 = vector.load %arg3[%c0_2, %c0_3] : memref<32x96xf32, #tpu.memory_space<vmem>>, vector<32x96xf32>
    %cst = arith.constant dense<0.000000e+00> : vector<16x96xf32>
    %5 = tpu.matmul %3, %4, %cst {dimension_numbers = #tpu.dot_dimension_numbers<[1], [0], [0], [1], [0, 0, 1, 1], [], []>} : vector<16x32xf32>, vector<32x96xf32>, vector<16x96xf32> -> vector<16x96xf32>
    %c0_4 = arith.constant 0 : index
    %c0_5 = arith.constant 0 : index
    %6 = vector.load %arg4[%c0_4, %c0_5] : memref<1x96xf32, #tpu.memory_space<vmem>>, vector<1x96xf32>
    %7 = vector.broadcast %6 : vector<1x96xf32> to vector<16x96xf32>
    %8 = arith.addf %5, %7 : vector<16x96xf32>
    %9 = vector.extract_strided_slice %8 {offsets = [0, 0], sizes = [16, 48], strides = [1, 1]} : vector<16x96xf32> to vector<16x48xf32>
    %10 = vector.extract_strided_slice %8 {offsets = [0, 48], sizes = [16, 48], strides = [1, 1]} : vector<16x96xf32> to vector<16x48xf32>
    %11 = arith.negf %9 : vector<16x48xf32>
    %12 = math.exp %11 : vector<16x48xf32>
    %cst_6 = arith.constant 1.000000e+00 : f32
    %13 = vector.broadcast %cst_6 : f32 to vector<16x48xf32>
    %14 = arith.addf %13, %12 : vector<16x48xf32>
    %15 = arith.divf %13, %14 : vector<16x48xf32>
    %16 = arith.mulf %9, %15 : vector<16x48xf32>
    %17 = arith.mulf %16, %10 : vector<16x48xf32>
    %c0_7 = arith.constant 0 : index
    %c0_8 = arith.constant 0 : index
    %18 = vector.load %arg8[%c0_7, %c0_8] : memref<16x32xf32, #tpu.memory_space<vmem>>, vector<16x32xf32>
    %c0_9 = arith.constant 0 : index
    %c0_10 = arith.constant 0 : index
    %19 = vector.load %arg5[%c0_9, %c0_10] : memref<48x32xf32, #tpu.memory_space<vmem>>, vector<48x32xf32>
    %cst_11 = arith.constant dense<0.000000e+00> : vector<16x32xf32>
    %20 = tpu.matmul %17, %19, %cst_11 {dimension_numbers = #tpu.dot_dimension_numbers<[1], [0], [0], [1], [0, 0, 1, 1], [], []>} : vector<16x48xf32>, vector<48x32xf32>, vector<16x32xf32> -> vector<16x32xf32>
    %21 = arith.addf %18, %20 : vector<16x32xf32>
    %c0_12 = arith.constant 0 : index
    %c0_13 = arith.constant 0 : index
    %22 = vector.load %arg8[%c0_12, %c0_13] : memref<16x32xf32, #tpu.memory_space<vmem>>, vector<16x32xf32>
    tpu.vector_store %arg8[%c0_12, %c0_13], %21 {strides = array<i32>} : memref<16x32xf32, #tpu.memory_space<vmem>>, vector<16x32xf32>,
    %c0_i32_14 = arith.constant 0 : i32
    %23 = arith.cmpi eq, %arg1, %c0_i32_14 : i32
    %24 = arith.extui %23 : i1 to i32
    %c0_i32_15 = arith.constant 0 : i32
    %25 = arith.cmpi ne, %24, %c0_i32_15 : i32
    scf.if %25 {
      %c0_16 = arith.constant 0 : index
      %c0_17 = arith.constant 0 : index
      %26 = vector.load %arg8[%c0_16, %c0_17] : memref<16x32xf32, #tpu.memory_space<vmem>>, vector<16x32xf32>
      %c0_18 = arith.constant 0 : index
      %c0_19 = arith.constant 0 : index
      %27 = vector.load %arg6[%c0_18, %c0_19] : memref<1x32xf32, #tpu.memory_space<vmem>>, vector<1x32xf32>
      %28 = vector.broadcast %27 : vector<1x32xf32> to vector<16x32xf32>
      %29 = arith.addf %26, %28 : vector<16x32xf32>
      %c0_20 = arith.constant 0 : index
      %c0_21 = arith.constant 0 : index
      %30 = vector.load %arg7[%c0_20, %c0_21] : memref<16x32xf32, #tpu.memory_space<vmem>>, vector<16x32xf32>
      tpu.vector_store %arg7[%c0_20, %c0_21], %29 {strides = array<i32>} : memref<16x32xf32, #tpu.memory_space<vmem>>, vector<16x32xf32>,
    } else {
    }
    return
  }
  func.func @transform_0(%arg0: i32, %arg1: i32) -> (i32, i32) {
    %c0_i32 = arith.constant 0 : i32
    %c0_i32_0 = arith.constant 0 : i32
    return %arg0, %c0_i32 : i32, i32
  }
  func.func @transform_1(%arg0: i32, %arg1: i32) -> (i32, i32) {
    %c0_i32 = arith.constant 0 : i32
    %c0_i32_0 = arith.constant 0 : i32
    return %c0_i32, %arg1 : i32, i32
  }
  func.func @transform_2(%arg0: i32, %arg1: i32) -> (i32, i32) {
    %c0_i32 = arith.constant 0 : i32
    %c0_i32_0 = arith.constant 0 : i32
    return %c0_i32, %arg1 : i32, i32
  }
  func.func @transform_3(%arg0: i32, %arg1: i32) -> (i32, i32) {
    %c0_i32 = arith.constant 0 : i32
    %c0_i32_0 = arith.constant 0 : i32
    return %arg1, %c0_i32 : i32, i32
  }
  func.func @transform_4(%arg0: i32, %arg1: i32) -> (i32, i32) {
    %c0_i32 = arith.constant 0 : i32
    %c0_i32_0 = arith.constant 0 : i32
    %c0_i32_1 = arith.constant 0 : i32
    return %c0_i32, %c0_i32_0 : i32, i32
  }
  func.func @transform_5(%arg0: i32, %arg1: i32) -> (i32, i32) {
    %c0_i32 = arith.constant 0 : i32
    %c0_i32_0 = arith.constant 0 : i32
    return %arg0, %c0_i32 : i32, i32
  }
}

</mosaic_0001>

<llo_original>
// kernel: _mlp_swiglu_call.1
$region0: #{_mlp_swiglu_call.1}
  #allocation0 [shape = 'u32[]', space=smem, size = 0x4, offset = 0x4, fixed_abs, tag = 'smem constant byte address 0x4 - core index']
  #allocation1 [shape = 'u32[144,128]{1,0:T(1,128)}', space=vmem, size = 0x12000, scoped, tag = 'internal scratch']
  #allocation2 [shape = 'f32[16,32]{1,0:T(8,128)}', space=vmem, size = 0x2000, scoped, tag = 'scratch operand']
  %s0 = inlined_call_operand.vmem [shape: f32[16,32], index: 0, kind: input, shape index: {}]
  %s1 = inlined_call_operand.vmem [shape: f32[32,96], index: 1, kind: input, shape index: {}]
  %s2 = inlined_call_operand.vmem [shape: f32[1,96], index: 2, kind: input, shape index: {}]
  %s3 = inlined_call_operand.vmem [shape: f32[48,32], index: 3, kind: input, shape index: {}]
  %s4 = inlined_call_operand.vmem [shape: f32[1,32], index: 4, kind: input, shape index: {}]
  %s5 = inlined_call_operand.hbm [shape: f32[16,32], index: 5, kind: output, shape index: {}]
  %s6 = sld [smem:[#allocation0]]
  $region38: #{_mlp_swiglu_call.1} parent=0
    _
  %s8 = ssub.s32 1, %s6
  %s9 = scalar_select 0, %s8, %s6
  $region1: #{_mlp_swiglu_call.1} parent=0
    #allocation3 [shape = 'u8[8192]{0}', space=vmem, size = 0x2000, scoped, tag = 'output window, operand 0, single buffered']
    #allocation4 [shape = 's32[1]{0}', space=sflag, size = 0x4, scoped, tag = 'scoped memory for _mlp_swiglu_call.1']
    %10 = vsyncpa [#allocation4], 0
    // Predicated region
    $region2: #{_mlp_swiglu_call.1} parent=1 // pred_check
      _
    $region3: #{_mlp_swiglu_call.1} parent=1 // pred_check_branch
      %12 = sbr.rel (0) target = $region5
    $region4: #{_mlp_swiglu_call.1} parent=1 // pred_region
      _
    $region5: #{_mlp_swiglu_call.1} parent=1 // pred_fallthru
      _
    // Predicated region
    $region6: #{_mlp_swiglu_call.1} parent=1 // pred_check
      _
    $region7: #{_mlp_swiglu_call.1} parent=1 // pred_check_branch
      %14 = sbr.rel (0) target = $region9
    $region8: #{_mlp_swiglu_call.1} parent=1 // pred_region
      _
    $region9: #{_mlp_swiglu_call.1} parent=1 // pred_fallthru
      _
    // Predicated region
    $region10: #{_mlp_swiglu_call.1} parent=1 // pred_check
      _
    $region11: #{_mlp_swiglu_call.1} parent=1 // pred_check_branch
      %16 = sbr.rel (0) target = $region13
    $region12: #{_mlp_swiglu_call.1} parent=1 // pred_region
      _
    $region13: #{_mlp_swiglu_call.1} parent=1 // pred_fallthru
      _
    // Predicated region
    $region14: #{_mlp_swiglu_call.1} parent=1 // pred_check
      _
    $region15: #{_mlp_swiglu_call.1} parent=1 // pred_check_branch
      %18 = sbr.rel (0) target = $region17
    $region16: #{_mlp_swiglu_call.1} parent=1 // pred_region
      _
    $region17: #{_mlp_swiglu_call.1} parent=1 // pred_fallthru
      _
    // Predicated region
    $region18: #{_mlp_swiglu_call.1} parent=1 // pred_check
      _
    $region19: #{_mlp_swiglu_call.1} parent=1 // pred_check_branch
      %20 = sbr.rel (0) target = $region21
    $region20: #{_mlp_swiglu_call.1} parent=1 // pred_region
      _
    $region21: #{_mlp_swiglu_call.1} parent=1 // pred_fallthru
      _
    %p21 = scmp.eq.s32.totalorder 0, 0
    // Predicated region
    $region22: #{_mlp_swiglu_call.1} parent=1 // pred_check
      %p22 = pneg %p21
    $region23: #{_mlp_swiglu_call.1} parent=1 // pred_check_branch
      %24 = sbr.rel (%p22) target = $region25
    $region24: #{_mlp_swiglu_call.1} parent=1 // pred_region
      %vm25 = vcmask 261120
      %26 = vst.msk [vmem:[#allocation2] sm:$0xff] %vm25, 0.0
      %27 = vst.msk [vmem:[#allocation2 + $0x8] sm:$0xff] %vm25, 0.0
    $region25: #{_mlp_swiglu_call.1} parent=1 // pred_fallthru
      _
    %v28 = vld [vmem:[%s0] sm:$0xff]
    %v29 = vld [vmem:[%s0 + $0x8] sm:$0xff]
    %v30 = vld [vmem:[%s1] sm:$0xff]
    %v31 = vld [vmem:[%s1 + $0x8] sm:$0xff]
    %v32 = vld [vmem:[%s1 + $0x10] sm:$0xff]
    %v33 = vld [vmem:[%s1 + $0x18] sm:$0xff]
    %v34 = vld [vmem:[%s2] sm:$0x1]
    %v36 = vlaneseq
    %v37 = vshrl.u32 %v36, 7
    %v38 = vsub.s32 0, %v37
    %v39 = vrot.slane %v34, %v38
    %vm41 = vcmask 261120
    %v43 = vsel %vm41, %v28, 0
    %v46 = vsel %vm41, %v29, 0
    %48 = vmatprep.subr.mxu0 0.0
    %49 = vmatpush1.msra.mxu0 %v30
    %50 = vmatprep.subr.mxu0 0.0
    %51 = vmatpush1.msra.mxu0 %v31
    %52 = vmatprep.subr.mxu0 0.0
    %53 = vmatpush1.msra.mxu0 %v32
    %54 = vmatprep.subr.mxu0 0.0
    %55 = vmatpush1.msra.mxu0 %v33
    %56 = vmatprep.subr.mxu0 0.0
    %57 = vmatpush1.msra.mxu0 0.0
    %58 = vmatprep.subr.mxu0 0.0
    %59 = vmatpush1.msra.mxu0 0.0
    %60 = vmatprep.subr.mxu0 0.0
    %61 = vmatpush1.msra.mxu0 0.0
    %62 = vmatprep.subr.mxu0 0.0
    %63 = vmatpush1.msra.mxu0 0.0
    %64 = vmatprep.subr.mxu0 0.0
    %65 = vmatpush1.msra.mxu0 0.0
    %66 = vmatprep.subr.mxu0 0.0
    %67 = vmatpush1.msra.mxu0 0.0
    %68 = vmatprep.subr.mxu0 0.0
    %69 = vmatpush1.msra.mxu0 0.0
    %70 = vmatprep.subr.mxu0 0.0
    %71 = vmatpush1.msra.mxu0 0.0
    %72 = vmatprep.subr.mxu0 0.0
    %73 = vmatpush1.msra.mxu0 0.0
    %74 = vmatprep.subr.mxu0 0.0
    %75 = vmatpush1.msra.mxu0 0.0
    %76 = vmatprep.subr.mxu0 0.0
    %77 = vmatpush1.msra.mxu0 0.0
    %78 = vmatprep.subr.mxu0 0.0
    %79 = vmatpush1.msra.mxu0 0.0
    %80 = vmatprep.subr.mxu0 0.0
    %81 = vmatpush1.msra.mxu0 0.0
    %82 = vmatprep.subr.mxu0 0.0
    %83 = vmatpush1.msra.mxu0 0.0
    %84 = vmatprep.subr.mxu0 0.0
    %85 = vmatpush1.msra.mxu0 0.0
    %86 = vmatprep.subr.mxu0 0.0
    %87 = vmatpush1.msra.mxu0 0.0
    %88 = vmatprep.subr.mxu0 0.0
    %89 = vmatpush1.msra.mxu0 0.0
    %90 = vmatprep.subr.mxu0 0.0
    %91 = vmatpush1.msra.mxu0 0.0
    %92 = vmatprep.subr.mxu0 0.0
    %93 = vmatpush1.msra.mxu0 0.0
    %94 = vmatprep.subr.mxu0 0.0
    %95 = vmatpush1.msra.mxu0 0.0
    %96 = vmatprep.subr.mxu0 0.0
    %97 = vmatpush1.msra.mxu0 0.0
    %98 = vmatprep.subr.mxu0 0.0
    %99 = vmatpush1.msra.mxu0 0.0
    %100 = vmatprep.subr.mxu0 0.0
    %101 = vmatpush1.msra.mxu0 0.0
    %102 = vmatprep.subr.mxu0 0.0
    %103 = vmatpush1.msra.mxu0 0.0
    %104 = vmatprep.subr.mxu0 0.0
    %105 = vmatpush1.msra.mxu0 0.0
    %106 = vmatprep.subr.mxu0 0.0
    %107 = vmatpush1.msra.mxu0 0.0
    %108 = vmatprep.subr.mxu0 0.0
    %109 = vmatpush1.msra.mxu0 0.0
    %110 = vmatprep.subr.mxu0 0.0
    %111 = vmatpush1.msra.mxu0 0.0
    %112 = vmatprep.mubr.f32.mxu0 0.0
    %113 = vmatmul.mubr.f32.gmra.mrb[0].mxu0 %v43
    %v114 = vpop.f32.mrb[0].mxu0
    %v115 = vadd.f32 %v39, %v114
    %v116 = vpop.f32.mrb[0].mxu0
    %117 = vmatprep.mubr.f32.mxu0 0.0
    %118 = vmatmul.mubr.f32.gmra.mrb[0].mxu0 %v46
    %v119 = vpop.f32.mrb[0].mxu0
    %v120 = vadd.f32 %v39, %v119
    %v121 = vpop.f32.mrb[0].mxu0
    %122 = vdwg.mxu0
    %v123 = vxor.u32 %v115, 2147483648
    %v124 = vxor.u32 %v120, 2147483648
    %v125 = vmul.f32 %v123, 1.442695
    %v126 = vpow.pop %v125
    %v127 = vmul.f32 %v124, 1.442695
    %v128 = vpow.pop %v127
    %v129 = vadd.f32 %v126, 1.0
    %v130 = vadd.f32 %v128, 1.0
    %v131 = vrcp.pop %v129
    %v132 = vmul.f32 1.0, %v131
    %v133 = vrcp.pop %v130
    %v134 = vmul.f32 1.0, %v133
    %v135 = vmul.f32 %v115, %v132
    %v136 = vmul.f32 %v120, %v134
    %139 = vrot.lane.b32.xlu0 %v115, 80
    %v140 = vpop.permute.xlu0 %139
    %141 = vrot.lane.b32.xlu0 %v120, 80
    %v142 = vpop.permute.xlu0 %141
    %v145 = vmul.f32 %v135, %v140
    %v146 = vmul.f32 %v136, %v142
    %v147 = vld [vmem:[#allocation2] sm:$0xff]
    %v148 = vld [vmem:[#allocation2 + $0x8] sm:$0xff]
    %v149 = vld [vmem:[%s3] sm:$0xff]
    %v150 = vld [vmem:[%s3 + $0x8] sm:$0xff]
    %v151 = vld [vmem:[%s3 + $0x10] sm:$0xff]
    %v152 = vld [vmem:[%s3 + $0x18] sm:$0xff]
    %v153 = vld [vmem:[%s3 + $0x20] sm:$0xff]
    %v154 = vld [vmem:[%s3 + $0x28] sm:$0xff]
    %vm155 = vcmask 392192
    %v157 = vsel %vm155, %v145, 0
    %v160 = vsel %vm155, %v146, 0
    %162 = vmatprep.subr.mxu0 0.0
    %163 = vmatpush1.msra.mxu0 %v149
    %164 = vmatprep.subr.mxu0 0.0
    %165 = vmatpush1.msra.mxu0 %v150
    %166 = vmatprep.subr.mxu0 0.0
    %167 = vmatpush1.msra.mxu0 %v151
    %168 = vmatprep.subr.mxu0 0.0
    %169 = vmatpush1.msra.mxu0 %v152
    %170 = vmatprep.subr.mxu0 0.0
    %171 = vmatpush1.msra.mxu0 %v153
    %172 = vmatprep.subr.mxu0 0.0
    %173 = vmatpush1.msra.mxu0 %v154
    %174 = vmatprep.subr.mxu0 0.0
    %175 = vmatpush1.msra.mxu0 0.0
    %176 = vmatprep.subr.mxu0 0.0
    %177 = vmatpush1.msra.mxu0 0.0
    %178 = vmatprep.subr.mxu0 0.0
    %179 = vmatpush1.msra.mxu0 0.0
    %180 = vmatprep.subr.mxu0 0.0
    %181 = vmatpush1.msra.mxu0 0.0
    %182 = vmatprep.subr.mxu0 0.0
    %183 = vmatpush1.msra.mxu0 0.0
    %184 = vmatprep.subr.mxu0 0.0
    %185 = vmatpush1.msra.mxu0 0.0
    %186 = vmatprep.subr.mxu0 0.0
    %187 = vmatpush1.msra.mxu0 0.0
    %188 = vmatprep.subr.mxu0 0.0
    %189 = vmatpush1.msra.mxu0 0.0
    %190 = vmatprep.subr.mxu0 0.0
    %191 = vmatpush1.msra.mxu0 0.0
    %192 = vmatprep.subr.mxu0 0.0
    %193 = vmatpush1.msra.mxu0 0.0
    %194 = vmatprep.subr.mxu0 0.0
    %195 = vmatpush1.msra.mxu0 0.0
    %196 = vmatprep.subr.mxu0 0.0
    %197 = vmatpush1.msra.mxu0 0.0
    %198 = vmatprep.subr.mxu0 0.0
    %199 = vmatpush1.msra.mxu0 0.0
    %200 = vmatprep.subr.mxu0 0.0
    %201 = vmatpush1.msra.mxu0 0.0
    %202 = vmatprep.subr.mxu0 0.0
    %203 = vmatpush1.msra.mxu0 0.0
    %204 = vmatprep.subr.mxu0 0.0
    %205 = vmatpush1.msra.mxu0 0.0
    %206 = vmatprep.subr.mxu0 0.0
    %207 = vmatpush1.msra.mxu0 0.0
    %208 = vmatprep.subr.mxu0 0.0
    %209 = vmatpush1.msra.mxu0 0.0
    %210 = vmatprep.subr.mxu0 0.0
    %211 = vmatpush1.msra.mxu0 0.0
    %212 = vmatprep.subr.mxu0 0.0
    %213 = vmatpush1.msra.mxu0 0.0
    %214 = vmatprep.subr.mxu0 0.0
    %215 = vmatpush1.msra.mxu0 0.0
    %216 = vmatprep.subr.mxu0 0.0
    %217 = vmatpush1.msra.mxu0 0.0
    %218 = vmatprep.subr.mxu0 0.0
    %219 = vmatpush1.msra.mxu0 0.0
    %220 = vmatprep.subr.mxu0 0.0
    %221 = vmatpush1.msra.mxu0 0.0
    %222 = vmatprep.subr.mxu0 0.0
    %223 = vmatpush1.msra.mxu0 0.0
    %224 = vmatprep.subr.mxu0 0.0
    %225 = vmatpush1.msra.mxu0 0.0
    %226 = vmatprep.mubr.f32.mxu0 0.0
    %227 = vmatmul.mubr.f32.gmra.mrb[0].mxu0 %v157
    %v228 = vpop.f32.mrb[0].mxu0
    %v229 = vadd.f32 0.0, %v228
    %v230 = vpop.f32.mrb[0].mxu0
    %231 = vmatprep.mubr.f32.mxu0 0.0
    %232 = vmatmul.mubr.f32.gmra.mrb[0].mxu0 %v160
    %v233 = vpop.f32.mrb[0].mxu0
    %v234 = vadd.f32 0.0, %v233
    %v235 = vpop.f32.mrb[0].mxu0
    %236 = vdwg.mxu0
    %v237 = vadd.f32 %v147, %v229
    %v238 = vadd.f32 %v148, %v234
    %239 = vst.msk [vmem:[#allocation2] sm:$0xff] %vm41, %v237
    %240 = vst.msk [vmem:[#allocation2 + $0x8] sm:$0xff] %vm41, %v238
    // Predicated region
    $region26: #{_mlp_swiglu_call.1} parent=1 // pred_check
      %p241 = pneg %p21
    $region27: #{_mlp_swiglu_call.1} parent=1 // pred_check_branch
      %243 = sbr.rel (%p241) target = $region29
    $region28: #{_mlp_swiglu_call.1} parent=1 // pred_region
      %v244 = vld [vmem:[#allocation2] sm:$0xff]
      %v245 = vld [vmem:[#allocation2 + $0x8] sm:$0xff]
      %v246 = vld [vmem:[%s4] sm:$0x1]
      %v248 = vlaneseq
      %v249 = vshrl.u32 %v248, 7
      %v250 = vsub.s32 0, %v249
      %v251 = vrot.slane %v246, %v250
      %v253 = vadd.f32 %v244, %v251
      %v254 = vadd.f32 %v245, %v251
      %255 = vst.msk [vmem:[#allocation3] sm:$0xff] %vm41, %v253
      %256 = vst.msk [vmem:[#allocation3 + $0x8] sm:$0xff] %vm41, %v254
    $region29: #{_mlp_swiglu_call.1} parent=1 // pred_fallthru
      _
    // Predicated region
    $region30: #{_mlp_swiglu_call.1} parent=1 // pred_check
      _
    $region31: #{_mlp_swiglu_call.1} parent=1 // pred_check_branch
      %258 = sbr.rel (0) target = $region33
    $region32: #{_mlp_swiglu_call.1} parent=1 // pred_region
      %s260 = ssub.s32 256, 256
      %261 = vsyncadd [#allocation4], %s260
      %s262 = sshll.u32 [#allocation3], 4
      %s263 = int_to_ptr.vmem [resolvable:$true] %s262
      %268 = dma.vmem_to_hbm [thread:$0]  %s263, 256, %s5, [#allocation4], 128, 128, 8
    $region33: #{_mlp_swiglu_call.1} parent=1 // pred_fallthru
      _
    // Predicated region
    $region34: #{_mlp_swiglu_call.1} parent=1 // pred_check
      _
    $region35: #{_mlp_swiglu_call.1} parent=1 // pred_check_branch
      %270 = sbr.rel (0) target = $region37
    $region36: #{_mlp_swiglu_call.1} parent=1 // pred_region
      %271 = dma.done [#allocation4], 256
    $region37: #{_mlp_swiglu_call.1} parent=1 // pred_fallthru
      _
    %272 = vsyncpa [#allocation4], 1

</llo_original>
